<compile_context>
chip_gen: v7x
topology: tpu7x:2x2x1
jax: 0.10.0
libtpu: 0.0.40
codegen_flags: <defaults>
</compile_context>

<pallas_src>
import numpy as np
import jax
import jax.numpy as jnp
from jax.experimental import pallas as pl
from jax.experimental.pallas import tpu as pltpu


_VMEM_LIMIT_BYTES = 32 * 1024 * 1024  # <= physical VMEM on v5e/v6e (128 MiB) and v7x (64 MiB)


def _round_up(x, m):
    return -(-x // m) * m


def _vmem_budget_bytes():
    """VMEM budget for the streamed (double-buffered) blocks, generation aware."""
    try:
        cap = getattr(pltpu.get_tpu_info(), "vmem_capacity_bytes", None)
    except Exception:
        cap = None
    if not cap:
        cap = 64 * 1024 * 1024        # assume the smallest (v7x per-core) when unknown
    return min(cap // 3, 24 * 1024 * 1024)


def _pick_batch_tile(B, S, Kp, Hp, in_bytes, out_bytes, target_rows=1024):
    """Largest batch tile bb (bb | B) whose pipeline fits the VMEM budget.

    Rows per grid step = bb * S; we target ~1k rows (per-step overhead
    ~0.35 us is then small against a memory-bound step) while the
    double-buffered patch + output blocks plus the single-buffered weight and
    add table stay inside the generation's VMEM budget, and we keep >= 2 grid
    steps so both TensorCores get work under dimension_semantics=("parallel",).
    """
    budget = _vmem_budget_bytes()
    resident = Kp * Hp * in_bytes + S * Hp * 4

    def fits(bb):
        streamed = 2 * bb * S * Kp * in_bytes + 2 * bb * S * Hp * out_bytes
        return (resident + streamed <= budget
                and bb * S <= max(target_rows, S)
                and bb <= 32)

    best = 1
    for bb in range(1, B + 1):
        if B % bb == 0 and fits(bb):
            best = bb
    if B // best < 2:                      # prefer >= 2 grid steps (megacore / v7x)
        for bb in range(best - 1, 0, -1):
            if B % bb == 0 and B // bb >= 2 and fits(bb):
                best = bb
                break
    return best


def embeddings_kernel(p_ref, w_ref, add_ref, out_ref):
    # p_ref:   (bb, S, Kp)  compute-dtype patch rows; row 0 of every batch is an
    #                       all-zero row standing in for the cls token.
    # w_ref:   (Kp, Hp)     projection weight, un-blocked resident VMEM operand.
    # add_ref: (S, Hp)      f32 additive table: row 0 = cls_token + pos[0],
    #                       rows 1.. = conv bias + pos[1:].
    # out_ref: (bb, S, Hp)  final-layout embeddings for this batch tile.
    w = w_ref[...]
    add = add_ref[...]
    for b in range(p_ref.shape[0]):        # static unroll over the batch tile
        acc = jnp.dot(p_ref[b], w, preferred_element_type=jnp.float32)
        out_ref[b] = (acc + add).astype(out_ref.dtype)


def embeddings_forward(x_nchw, conv_w, conv_b, cls_token, pos_emb, patch_size,
                       compute_dtype=jnp.bfloat16):
    B, C, H, W = x_nchw.shape
    P = patch_size
    nph, npw = H // P, W // P
    NP = nph * npw
    S = NP + 1
    hidden = conv_w.shape[0]
    K = C * P * P
    out_dtype = x_nchw.dtype
    in_bytes = int(np.dtype(compute_dtype).itemsize)
    out_bytes = int(np.dtype(out_dtype).itemsize)

    # --- patch extraction (B,C,H,W) -> (B, NP, K) with (c, ph, pw) ordering,
    #     matching the flattened PyTorch Conv2d weight ---
    patches = x_nchw.reshape(B, C, nph, P, npw, P)
    patches = patches.transpose(0, 2, 4, 1, 3, 5).reshape(B, NP, K)
    # TODO(synk): this transpose materializes (B, S, K) in HBM; fuse it into the
    # kernel's input DMA (allow_input_fusion / manual gather) to drop ~1/3 of
    # the input-side traffic.

    # lane-dense padding of the contraction and hidden dims (no-op for real ViT)
    Kp = _round_up(max(K, 128), 128)
    Hp = _round_up(max(hidden, 128), 128)

    # one zero "patch" row per batch -> the cls row comes out of the same
    # matmul (0 @ W + add-table row 0) and the kernel writes the final layout
    patches = jnp.pad(patches, ((0, 0), (1, 0), (0, Kp - K))).astype(compute_dtype)

    # conv weight (hidden, C, P, P) -> (Kp, Hp), streamed in compute dtype
    w2d = conv_w.reshape(hidden, K).T
    w2d = jnp.pad(w2d, ((0, Kp - K), (0, Hp - hidden))).astype(compute_dtype)

    # additive table kept in f32 (added to the f32 accumulator; avoids double
    # rounding the bias/pos values through bf16)
    add = jnp.concatenate(
        [cls_token.reshape(1, hidden) + pos_emb[0, :1, :],
         conv_b[None, :] + pos_emb[0, 1:, :]], axis=0).astype(jnp.float32)
    add = jnp.pad(add, ((0, 0), (0, Hp - hidden)))

    bb = _pick_batch_tile(B, S, Kp, Hp, in_bytes, out_bytes)
    grid = (B // bb,)

    out = pl.pallas_call(
        embeddings_kernel,
        out_shape=jax.ShapeDtypeStruct((B, S, Hp), out_dtype),
        grid_spec=pltpu.PrefetchScalarGridSpec(
            num_scalar_prefetch=0,
            grid=grid,
            in_specs=[
                # streamed, double-buffered patch rows (sequence dim = full extent S)
                pl.BlockSpec((bb, S, Kp), lambda i: (i, 0, 0)),
                # resident operands: un-blocked, a single VMEM copy (no double buffer)
                pl.BlockSpec(memory_space=pltpu.MemorySpace.VMEM),
                pl.BlockSpec(memory_space=pltpu.MemorySpace.VMEM),
            ],
            out_specs=pl.BlockSpec((bb, S, Hp), lambda i: (i, 0, 0)),
        ),
        compiler_params=pltpu.CompilerParams(
            dimension_semantics=("parallel",),
            vmem_limit_bytes=_VMEM_LIMIT_BYTES,
        ),
    )(patches, w2d, add)

    if Hp != hidden:
        out = out[:, :, :hidden]            # no-op when hidden is a 128-multiple
    return out


def reference_forward(x_nchw, conv_w, conv_b, cls_token, pos_emb, patch_size,
                      quantize_matmul_inputs=False):
    """Pure-JAX reference of the PyTorch forward (eval mode)."""
    B, C, H, W = x_nchw.shape
    P = patch_size
    nph, npw = H // P, W // P
    NP = nph * npw
    hidden = conv_w.shape[0]
    patches = x_nchw.reshape(B, C, nph, P, npw, P)
    patches = patches.transpose(0, 2, 4, 1, 3, 5).reshape(B, NP, C * P * P)
    w = conv_w.reshape(hidden, -1).T
    if quantize_matmul_inputs:              # mirror the kernel's bf16 MXU inputs
        patches = patches.astype(jnp.bfloat16).astype(jnp.float32)
        w = w.astype(jnp.bfloat16).astype(jnp.float32)
    proj = patches @ w + conv_b
    cls = jnp.broadcast_to(cls_token, (B, 1, hidden))
    out = jnp.concatenate([cls, proj], axis=1) + pos_emb
    return out.astype(x_nchw.dtype)


def _run_case(B, C, IMG, P, HID):
    NP = (IMG // P) ** 2
    key = jax.random.PRNGKey(0)
    kx, kw, kb, kc, kp = jax.random.split(key, 5)
    x = jax.random.normal(kx, (B, C, IMG, IMG), dtype=jnp.float32)
    conv_w = jax.random.normal(kw, (HID, C, P, P), dtype=jnp.float32) * 0.02
    conv_b = jax.random.normal(kb, (HID,), dtype=jnp.float32) * 0.02
    cls_token = jax.random.normal(kc, (1, 1, HID), dtype=jnp.float32)
    pos_emb = jax.random.normal(kp, (1, NP + 1, HID), dtype=jnp.float32)

    fwd = jax.jit(embeddings_forward, static_argnums=(5,))
    out = jax.block_until_ready(fwd(x, conv_w, conv_b, cls_token, pos_emb, P))

    assert out.shape == (B, NP + 1, HID), out.shape
    assert out.dtype == x.dtype, out.dtype
    # tight check against a reference whose matmul inputs are bf16-quantized
    # exactly like the kernel's MXU inputs (only f32 accumulation-order differs)
    ref_q = reference_forward(x, conv_w, conv_b, cls_token, pos_emb, P,
                              quantize_matmul_inputs=True)
    assert jnp.allclose(out, ref_q, atol=2e-4, rtol=2e-4), "mismatch vs bf16-matched reference"
    # sanity check against the full-f32 module semantics (bf16 stream tolerance)
    ref = reference_forward(x, conv_w, conv_b, cls_token, pos_emb, P)
    assert jnp.allclose(out, ref, atol=5e-2, rtol=5e-2), "mismatch vs f32 reference"


if __name__ == "__main__":
    # config matching the module at toy scale:
    # image_size=16, patch_size=4, num_channels=4, hidden_size=32, batch=2
    _run_case(B=2, C=4, IMG=16, P=4, HID=32)
    # odd / unaligned shapes (K=147, S=5, B=3): exercises the K-padding path and
    # the NP-decoupled tiling that used to assert out on real ViT patch counts
    _run_case(B=3, C=3, IMG=14, P=7, HID=40)
    print("KERNEL_OK")
</pallas_src>

<mosaic_0001>
module attributes {stable_mosaic.version = 11 : i64} {
  func.func @embeddings_kernel(%arg0: i32, %arg1: memref<1x17x128xbf16, #tpu.memory_space<vmem>>, %arg2: memref<128x128xbf16, #tpu.memory_space<vmem>>, %arg3: memref<17x128xf32, #tpu.memory_space<vmem>>, %arg4: memref<1x17x128xf32, #tpu.memory_space<vmem>>) attributes {dimension_semantics = [#tpu.dimension_semantics<parallel>], iteration_bounds = array<i64: 2>, scalar_prefetch = 0 : i64, scratch_operands = 0 : i64, tpu.core_type = #tpu.core_type<tc>, window_params = [{transform_indices = @transform_0, window_bounds = array<i64: 1, 17, 128>}, {pipeline_mode = #tpu.pipeline_mode<synchronous>, transform_indices = @transform_1, window_bounds = array<i64: 128, 128>}, {pipeline_mode = #tpu.pipeline_mode<synchronous>, transform_indices = @transform_2, window_bounds = array<i64: 17, 128>}, {transform_indices = @transform_3, window_bounds = array<i64: 1, 17, 128>}]} {
    %c0 = arith.constant 0 : index
    %c0_0 = arith.constant 0 : index
    %0 = vector.load %arg2[%c0, %c0_0] : memref<128x128xbf16, #tpu.memory_space<vmem>>, vector<128x128xbf16>
    %c0_1 = arith.constant 0 : index
    %c0_2 = arith.constant 0 : index
    %1 = vector.load %arg3[%c0_1, %c0_2] : memref<17x128xf32, #tpu.memory_space<vmem>>, vector<17x128xf32>
    %c0_3 = arith.constant 0 : index
    %c0_4 = arith.constant 0 : index
    %c0_5 = arith.constant 0 : index
    %2 = vector.load %arg1[%c0_3, %c0_4, %c0_5] : memref<1x17x128xbf16, #tpu.memory_space<vmem>>, vector<1x17x128xbf16>
    %3 = vector.shape_cast %2 : vector<1x17x128xbf16> to vector<17x128xbf16>
    %cst = arith.constant dense<0.000000e+00> : vector<17x128xf32>
    %4 = tpu.matmul %3, %0, %cst {dimension_numbers = #tpu.dot_dimension_numbers<[1], [0], [0], [1], [0, 0, 1, 1], [], []>} : vector<17x128xbf16>, vector<128x128xbf16>, vector<17x128xf32> -> vector<17x128xf32>
    %5 = arith.addf %4, %1 : vector<17x128xf32>
    %c0_6 = arith.constant 0 : index
    %c0_7 = arith.constant 0 : index
    %c0_8 = arith.constant 0 : index
    %6 = vector.load %arg4[%c0_6, %c0_7, %c0_8] : memref<1x17x128xf32, #tpu.memory_space<vmem>>, vector<1x17x128xf32>
    %7 = vector.shape_cast %6 : vector<1x17x128xf32> to vector<17x128xf32>
    %8 = vector.shape_cast %5 : vector<17x128xf32> to vector<1x17x128xf32>
    tpu.vector_store %arg4[%c0_6, %c0_7, %c0_8], %8 {strides = array<i32>} : memref<1x17x128xf32, #tpu.memory_space<vmem>>, vector<1x17x128xf32>,
    return
  }
  func.func @transform_0(%arg0: i32) -> (i32, i32, i32) {
    %c0_i32 = arith.constant 0 : i32
    %c0_i32_0 = arith.constant 0 : i32
    %c0_i32_1 = arith.constant 0 : i32
    return %arg0, %c0_i32, %c0_i32_0 : i32, i32, i32
  }
  func.func @transform_1(%arg0: i32) -> (i32, i32) {
    %c0_i32 = arith.constant 0 : i32
    %c0_i32_0 = arith.constant 0 : i32
    %c0_i32_1 = arith.constant 0 : i32
    return %c0_i32, %c0_i32_0 : i32, i32
  }
  func.func @transform_2(%arg0: i32) -> (i32, i32) {
    %c0_i32 = arith.constant 0 : i32
    %c0_i32_0 = arith.constant 0 : i32
    %c0_i32_1 = arith.constant 0 : i32
    return %c0_i32, %c0_i32_0 : i32, i32
  }
  func.func @transform_3(%arg0: i32) -> (i32, i32, i32) {
    %c0_i32 = arith.constant 0 : i32
    %c0_i32_0 = arith.constant 0 : i32
    %c0_i32_1 = arith.constant 0 : i32
    return %arg0, %c0_i32, %c0_i32_0 : i32, i32, i32
  }
}

</mosaic_0001>

<llo_original>
// kernel: embeddings_forward.1
$region0: #{embeddings_forward.1}
  #allocation0 [shape = 'u32[]', space=smem, size = 0x4, offset = 0x4, fixed_abs, tag = 'smem constant byte address 0x4 - core index']
  #allocation1 [shape = 'u32[144,128]{1,0:T(1,128)}', space=vmem, size = 0x12000, scoped, tag = 'internal scratch']
  %s0 = inlined_call_operand.vmem [shape: bf16[2,17,128], index: 0, kind: input, shape index: {}]
  %s1 = inlined_call_operand.vmem [shape: bf16[128,128], index: 1, kind: input, shape index: {}]
  %s2 = inlined_call_operand.vmem [shape: f32[17,128], index: 2, kind: input, shape index: {}]
  %s3 = inlined_call_operand.vmem [shape: f32[2,17,128], index: 3, kind: output, shape index: {}]
  %s4 = sld [smem:[#allocation0]]
  $region45: #{embeddings_forward.1} parent=0
    _
  %s6 = ssub.s32 1, %s4
  %s7 = scalar_select 0, %s6, %s4
  loop: start=0, step=1, limit=4
  $region2: #{embeddings_forward.1} parent=0 // loop_pre_header
    _
  $region3: #{embeddings_forward.1} parent=0 // loop_header
    %s9 = sphi 0, %s13
    %p10 = scmp.ge.s32.totalorder %s9, 4
    %s19 = sphi 0, %s21
    %s22 = sphi 0, %s19
    %s23 = sphi 0, %s22
    %s39 = sphi 0, %s23
    %s43 = sphi 0, %s43
    %s45 = sphi 0, %s43
    %s46 = sphi 0, %s45
    %s60 = sphi 0, %s46
    %s64 = sphi 0, %s64
    %s66 = sphi 0, %s64
    %s67 = sphi 0, %s66
    %s81 = sphi 0, %s67
    %s87 = sphi 0, %s89
    %s90 = sphi 0, %s87
    %s91 = sphi 0, %s90
    %s107 = sphi 0, %s91
  $region4: #{embeddings_forward.1} parent=0 // loop_header_branch
    %12 = sbr.rel (%p10) target = $region8
  $region5: #{embeddings_forward.1} parent=0 // loop_body
    %s14 = ssub.s32 %s9, 1
    %s15 = ssub.s32 %s9, 2
    %s16 = sadd.s32 %s9, 1
    %s17 = ssub.s32 %s9, %s16
    %p18 = scmp.eq.s32.totalorder %s17, 0
    %s20 = sadd.s32 %s19, 1
    %s21 = scalar_select %p18, %s19, %s20
    %p24 = pneg %p18
    %p25 = scmp.eq.s32.totalorder %s9, 1
    %p26 = por %p24, %p25
    %p27 = scmp.ne.s32.totalorder %s19, %s22
    %p28 = scmp.eq.s32.totalorder %s9, 0
    %p29 = por %p27, %p28
    %p30 = scmp.ne.s32.totalorder %s19, %s22
    %p31 = scmp.eq.s32.totalorder %s14, 1
    %p32 = por %p30, %p31
    %p33 = scmp.ne.s32.totalorder %s22, %s23
    %p34 = scmp.eq.s32.totalorder %s14, 0
    %p35 = por %p33, %p34
    %p36 = scmp.ne.s32.totalorder %s22, %s23
    %p37 = scmp.eq.s32.totalorder %s15, 1
    %p38 = por %p36, %p37
    %p40 = scmp.ne.s32.totalorder %s23, %s39
    %p41 = scmp.eq.s32.totalorder %s15, 0
    %p42 = por %p40, %p41
    %s44 = sadd.s32 %s43, 1
    %p47 = scmp.eq.s32.totalorder %s9, 1
    %p48 = scmp.ne.s32.totalorder %s43, %s45
    %p49 = scmp.eq.s32.totalorder %s9, 0
    %p50 = por %p48, %p49
    %p51 = scmp.ne.s32.totalorder %s43, %s45
    %p52 = scmp.eq.s32.totalorder %s14, 1
    %p53 = por %p51, %p52
    %p54 = scmp.ne.s32.totalorder %s45, %s46
    %p55 = scmp.eq.s32.totalorder %s14, 0
    %p56 = por %p54, %p55
    %p57 = scmp.ne.s32.totalorder %s45, %s46
    %p58 = scmp.eq.s32.totalorder %s15, 1
    %p59 = por %p57, %p58
    %p61 = scmp.ne.s32.totalorder %s46, %s60
    %p62 = scmp.eq.s32.totalorder %s15, 0
    %p63 = por %p61, %p62
    %s65 = sadd.s32 %s64, 1
    %p68 = scmp.eq.s32.totalorder %s9, 1
    %p69 = scmp.ne.s32.totalorder %s64, %s66
    %p70 = scmp.eq.s32.totalorder %s9, 0
    %p71 = por %p69, %p70
    %p72 = scmp.ne.s32.totalorder %s64, %s66
    %p73 = scmp.eq.s32.totalorder %s14, 1
    %p74 = por %p72, %p73
    %p75 = scmp.ne.s32.totalorder %s66, %s67
    %p76 = scmp.eq.s32.totalorder %s14, 0
    %p77 = por %p75, %p76
    %p78 = scmp.ne.s32.totalorder %s66, %s67
    %p79 = scmp.eq.s32.totalorder %s15, 1
    %p80 = por %p78, %p79
    %p82 = scmp.ne.s32.totalorder %s67, %s81
    %p83 = scmp.eq.s32.totalorder %s15, 0
    %p84 = por %p82, %p83
    %s85 = ssub.s32 %s9, %s16
    %p86 = scmp.eq.s32.totalorder %s85, 0
    %s88 = sadd.s32 %s87, 1
    %s89 = scalar_select %p86, %s87, %s88
    %p92 = pneg %p86
    %p93 = scmp.eq.s32.totalorder %s9, 1
    %p94 = por %p92, %p93
    %p95 = scmp.ne.s32.totalorder %s87, %s90
    %p96 = scmp.eq.s32.totalorder %s9, 0
    %p97 = por %p95, %p96
    %p98 = scmp.ne.s32.totalorder %s87, %s90
    %p99 = scmp.eq.s32.totalorder %s14, 1
    %p100 = por %p98, %p99
    %p101 = scmp.ne.s32.totalorder %s90, %s91
    %p102 = scmp.eq.s32.totalorder %s14, 0
    %p103 = por %p101, %p102
    %p104 = scmp.ne.s32.totalorder %s90, %s91
    %p105 = scmp.eq.s32.totalorder %s15, 1
    %p106 = por %p104, %p105
    %p108 = scmp.ne.s32.totalorder %s91, %s107
    %p109 = scmp.eq.s32.totalorder %s15, 0
    %p110 = por %p108, %p109
    %p111 = scmp.le.s32.totalorder 1, %s9
    %p112 = scmp.lt.s32.totalorder %s9, 3
    %p113 = pnand %p111, %p112
    %p114 = pneg %p113
    // Predicated region
    $region9: #{embeddings_forward.1} parent=5 // pred_check
      _
    $region10: #{embeddings_forward.1} parent=5 // pred_check_branch
      %116 = sbr.rel (%p113) target = $region12
    $region11: #{embeddings_forward.1} parent=5 // pred_region
      %s117 = ssub.s32 %s9, 1
      // Predicated region
      $region13: #{embeddings_forward.1} parent=11 // pred_check
        %p118 = pneg %p56
      $region14: #{embeddings_forward.1} parent=11 // pred_check_branch
        %120 = sbr.rel (%p118) target = $region16
      $region15: #{embeddings_forward.1} parent=11 // pred_region
        _
      $region16: #{embeddings_forward.1} parent=11 // pred_fallthru
        _
      // Predicated region
      $region17: #{embeddings_forward.1} parent=11 // pred_check
        %p121 = pneg %p77
      $region18: #{embeddings_forward.1} parent=11 // pred_check_branch
        %123 = sbr.rel (%p121) target = $region20
      $region19: #{embeddings_forward.1} parent=11 // pred_region
        _
      $region20: #{embeddings_forward.1} parent=11 // pred_fallthru
        _
    $region12: #{embeddings_forward.1} parent=5 // pred_fallthru
      _
    %p124 = scmp.lt.s32.totalorder %s9, 2
    // Predicated region
    $region21: #{embeddings_forward.1} parent=5 // pred_check
      %p125 = pneg %p124
    $region22: #{embeddings_forward.1} parent=5 // pred_check_branch
      %127 = sbr.rel (%p125) target = $region24
    $region23: #{embeddings_forward.1} parent=5 // pred_region
      // Predicated region
      $region25: #{embeddings_forward.1} parent=23 // pred_check
        %p128 = pneg %p29
      $region26: #{embeddings_forward.1} parent=23 // pred_check_branch
        %130 = sbr.rel (%p128) target = $region28
      $region27: #{embeddings_forward.1} parent=23 // pred_region
        %p131 = scmp.lt.s32.totalorder %s9, 1
        %s132 = scalar_select %p131, %s9, 1
        %s133 = smul.addr %s132, 3
        %s134 = smul.addr %s133, 4
        %s135 = scalar_lea.vmem %s0, %s134
      $region28: #{embeddings_forward.1} parent=23 // pred_fallthru
        _
    $region24: #{embeddings_forward.1} parent=5 // pred_fallthru
      _
    %p136 = scmp.le.s32.totalorder 1, %s9
    %p137 = scmp.lt.s32.totalorder %s9, 3
    %p138 = pnand %p136, %p137
    %p139 = pneg %p138
    // Predicated region
    $region29: #{embeddings_forward.1} parent=5 // pred_check
      _
    $region30: #{embeddings_forward.1} parent=5 // pred_check_branch
      %141 = sbr.rel (%p138) target = $region32
    $region31: #{embeddings_forward.1} parent=5 // pred_region
      %s142 = ssub.s32 %s9, 1
      %p143 = scmp.lt.s32.totalorder %s14, 1
      %s144 = scalar_select %p143, %s14, 1
      %s145 = smul.addr %s144, 3
      %s146 = smul.addr %s145, 4
      %s147 = scalar_lea.vmem %s0, %s146
      %p148 = pneg %p35
      %p149 = pneg %p32
      %p150 = pneg %p56
      %p151 = pneg %p53
      %p152 = pneg %p77
      %p153 = pneg %p74
      %p154 = pneg %p103
      %p155 = pneg %p100
      %p156 = scmp.lt.s32.totalorder %s14, 1
      %s157 = scalar_select %p156, %s14, 1
      %s158 = smul.addr %s157, 3
      %s159 = smul.addr %s158, 8
      %s160 = scalar_lea.vmem %s3, %s159
      %p161 = scmp.lt.s32.totalorder %s14, 1
      %s162 = scalar_select %p161, %s14, 1
      %s163 = smul.addr %s162, 3
      %s164 = smul.addr %s163, 4
      %s165 = scalar_lea.vmem %s0, %s164
      %p166 = scmp.lt.s32.totalorder %s14, 1
      %s167 = scalar_select %p166, %s14, 1
      %s168 = smul.addr %s167, 3
      %s169 = smul.addr %s168, 8
      %s170 = scalar_lea.vmem %s3, %s169
      %v172 = vld [vmem:[%s1] sm:$0xf]
      %v173 = vld [vmem:[%s1 + $0x4] sm:$0xf]
      %v174 = vld [vmem:[%s1 + $0x8] sm:$0xf]
      %v175 = vld [vmem:[%s1 + $0xc] sm:$0xf]
      %v176 = vld [vmem:[%s1 + $0x10] sm:$0xf]
      %v177 = vld [vmem:[%s1 + $0x14] sm:$0xf]
      %v178 = vld [vmem:[%s1 + $0x18] sm:$0xf]
      %v179 = vld [vmem:[%s1 + $0x1c] sm:$0xf]
      %v180 = vld [vmem:[%s1 + $0x20] sm:$0xf]
      %v181 = vld [vmem:[%s1 + $0x24] sm:$0xf]
      %v182 = vld [vmem:[%s1 + $0x28] sm:$0xf]
      %v183 = vld [vmem:[%s1 + $0x2c] sm:$0xf]
      %v184 = vld [vmem:[%s1 + $0x30] sm:$0xf]
      %v185 = vld [vmem:[%s1 + $0x34] sm:$0xf]
      %v186 = vld [vmem:[%s1 + $0x38] sm:$0xf]
      %v187 = vld [vmem:[%s1 + $0x3c] sm:$0xf]
      %v188 = vld [vmem:[%s2] sm:$0xff]
      %v189 = vld [vmem:[%s2 + $0x8] sm:$0xff]
      %v190 = vld [vmem:[%s2 + $0x10] sm:$0x1]
      %v191 = vld [vmem:[%s165] sm:$0xf]
      %v192 = vld [vmem:[%s165 + $0x4] sm:$0xf]
      %v193 = vld [vmem:[%s165 + $0x8] sm:$0x1]
      %v197 = vunpack.c.l.b16 %v191
      %v198 = vunpack.c.l.b16 %v192
      %v199 = vunpack.c.l.b16 %v193
      %v200 = vpack.c.b16 %v198, %v197
      %v201 = vpack.c.b16 %v199, %v199
      %v220 = vunpack.c.l.b16 %v172
      %v221 = vunpack.c.l.b16 %v173
      %v222 = vunpack.c.l.b16 %v174
      %v223 = vunpack.c.l.b16 %v175
      %v224 = vunpack.c.l.b16 %v176
      %v225 = vunpack.c.l.b16 %v177
      %v226 = vunpack.c.l.b16 %v178
      %v227 = vunpack.c.l.b16 %v179
      %v228 = vunpack.c.l.b16 %v180
      %v229 = vunpack.c.l.b16 %v181
      %v230 = vunpack.c.l.b16 %v182
      %v231 = vunpack.c.l.b16 %v183
      %v232 = vunpack.c.l.b16 %v184
      %v233 = vunpack.c.l.b16 %v185
      %v234 = vunpack.c.l.b16 %v186
      %v235 = vunpack.c.l.b16 %v187
      %v236 = vpack.c.b16 %v221, %v220
      %v237 = vpack.c.b16 %v223, %v222
      %v238 = vpack.c.b16 %v225, %v224
      %v239 = vpack.c.b16 %v227, %v226
      %v240 = vpack.c.b16 %v229, %v228
      %v241 = vpack.c.b16 %v231, %v230
      %v242 = vpack.c.b16 %v233, %v232
      %v243 = vpack.c.b16 %v235, %v234
      %252 = vmatprep.subr.bf16.mxu0 0
      %253 = vmatpush1.bf16.msra.mxu0 %v236
      %254 = vmatprep.subr.bf16.mxu0 0
      %255 = vmatpush1.bf16.msra.mxu0 %v237
      %256 = vmatprep.subr.bf16.mxu0 0
      %257 = vmatpush1.bf16.msra.mxu0 %v238
      %258 = vmatprep.subr.bf16.mxu0 0
      %259 = vmatpush1.bf16.msra.mxu0 %v239
      %260 = vmatprep.subr.bf16.mxu0 0
      %261 = vmatpush1.bf16.msra.mxu0 %v240
      %262 = vmatprep.subr.bf16.mxu0 0
      %263 = vmatpush1.bf16.msra.mxu0 %v241
      %264 = vmatprep.subr.bf16.mxu0 0
      %265 = vmatpush1.bf16.msra.mxu0 %v242
      %266 = vmatprep.subr.bf16.mxu0 0
      %267 = vmatpush1.bf16.msra.mxu0 %v243
      %268 = vmatprep.subr.bf16.mxu0 0
      %269 = vmatpush1.bf16.msra.mxu0 0
      %270 = vmatprep.subr.bf16.mxu0 0
      %271 = vmatpush1.bf16.msra.mxu0 0
      %272 = vmatprep.subr.bf16.mxu0 0
      %273 = vmatpush1.bf16.msra.mxu0 0
      %274 = vmatprep.subr.bf16.mxu0 0
      %275 = vmatpush1.bf16.msra.mxu0 0
      %276 = vmatprep.subr.bf16.mxu0 0
      %277 = vmatpush1.bf16.msra.mxu0 0
      %278 = vmatprep.subr.bf16.mxu0 0
      %279 = vmatpush1.bf16.msra.mxu0 0
      %280 = vmatprep.subr.bf16.mxu0 0
      %281 = vmatpush1.bf16.msra.mxu0 0
      %282 = vmatprep.subr.bf16.mxu0 0
      %283 = vmatpush1.bf16.msra.mxu0 0
      %284 = vmatprep.mubr.bf16.mxu0 0
      %285 = vmatmul.mubr.bf16.gmra.mrb[0].mxu0 %v200
      %v286 = vpop.f32.mrb[0].mxu0
      %v287 = vadd.f32 %v188, %v286
      %v288 = vpop.f32.mrb[0].mxu0
      %v289 = vpop.f32.mrb[0].mxu0
      %v290 = vadd.f32 %v189, %v289
      %v291 = vpop.f32.mrb[0].mxu0
      %292 = vmatprep.mubr.bf16.mxu0 0
      %293 = vmatmul.mubr.bf16.gmra.mrb[0].mxu0 %v201
      %v294 = vpop.f32.mrb[0].mxu0
      %v295 = vadd.f32 %v190, %v294
      %v296 = vpop.f32.mrb[0].mxu0
      %v297 = vpop.f32.mrb[0].mxu0
      %v298 = vpop.f32.mrb[0].mxu0
      %299 = vdwg.mxu0
      %300 = vst [vmem:[%s170] sm:$0xff] %v287
      %301 = vst [vmem:[%s170 + $0x8] sm:$0xff] %v290
      %302 = vst [vmem:[%s170 + $0x10] sm:$0x1] %v295
      %p303 = scmp.lt.s32.totalorder %s14, 1
      %s304 = scalar_select %p303, %s14, 1
      %s305 = smul.addr %s304, 3
      %s306 = smul.addr %s305, 8
      %s307 = scalar_lea.vmem %s3, %s306
      // Predicated region
      $region33: #{embeddings_forward.1} parent=31 // pred_check
        %p308 = pneg %p100
      $region34: #{embeddings_forward.1} parent=31 // pred_check_branch
        %310 = sbr.rel (%p308) target = $region36
      $region35: #{embeddings_forward.1} parent=31 // pred_region
        _
      $region36: #{embeddings_forward.1} parent=31 // pred_fallthru
        _
    $region32: #{embeddings_forward.1} parent=5 // pred_fallthru
      _
    %p311 = scmp.le.s32.totalorder 2, %s9
    // Predicated region
    $region37: #{embeddings_forward.1} parent=5 // pred_check
      %p312 = pneg %p311
    $region38: #{embeddings_forward.1} parent=5 // pred_check_branch
      %314 = sbr.rel (%p312) target = $region40
    $region39: #{embeddings_forward.1} parent=5 // pred_region
      %s315 = ssub.s32 %s9, 2
      // Predicated region
      $region41: #{embeddings_forward.1} parent=39 // pred_check
        %p316 = pneg %p106
      $region42: #{embeddings_forward.1} parent=39 // pred_check_branch
        %318 = sbr.rel (%p316) target = $region44
      $region43: #{embeddings_forward.1} parent=39 // pred_region
        %p319 = scmp.lt.s32.totalorder %s15, 1
        %s320 = scalar_select %p319, %s15, 1
        %s321 = smul.addr %s320, 3
        %s322 = smul.addr %s321, 8
        %s323 = scalar_lea.vmem %s3, %s322
      $region44: #{embeddings_forward.1} parent=39 // pred_fallthru
        _
    $region40: #{embeddings_forward.1} parent=5 // pred_fallthru
      _
  $region6: #{embeddings_forward.1} parent=0 // loop_footer
    %s13 = sadd.s32 1, %s9
  $region7: #{embeddings_forward.1} parent=0 // loop_footer_branch
    %8 = sbr.rel target = $region3
  $region8: #{embeddings_forward.1} parent=0 // loop_exit
    _

</llo_original>
